<compile_context>
chip_gen: v5e
topology: v5e:2x2
jax: 0.10.0
libtpu: 0.0.40
codegen_flags: <defaults>
</compile_context>

<pallas_src>
import math

import jax
import jax.numpy as jnp
from jax.experimental import pallas as pl
from jax.experimental.pallas import tpu as pltpu


def _vaswani_scores_kernel(enc_ref, v_ref, out_ref):
    """One grid step (batch block i, T tile j).

    enc_ref : (b_blk, t_tile, H)  encoder-output tile (caller dtype, streamed)
    v_ref   : (b_blk, H)          fused, pre-scaled score vector (same dtype)
    out_ref : (b_blk, t_tile) f32 raw (pre-softmax) scores for this tile
    """
    out_ref[...] = jnp.einsum(
        "bth,bh->bt", enc_ref[...], v_ref[...],
        preferred_element_type=jnp.float32)


def _pick_tiles(B, T, H, itemsize):
    """Pick (batch_block, t_tile, vmem_limit_bytes) with an explicit VMEM budget."""
    # (8,128) rule on the (b_blk, H) / (b_blk, t_tile) blocks: b_blk must be a
    # multiple of 8 or equal to the full batch dim.
    b_blk = B if B <= 8 else 8

    # Per-generation VMEM: v7x has 64 MiB physical, v5e/v6e have 128 MiB.
    try:
        phys = int(pltpu.get_tpu_info().vmem_capacity_bytes)
    except Exception:
        phys = 64 << 20          # conservative default (v7x-sized)
    vmem_limit = (48 << 20) if phys <= (64 << 20) else (64 << 20)

    # enc tile budget: <= 16 MiB per buffer (double-buffered -> 32 MiB); rows
    # are a multiple of 128 (lane-dense output stores), capped at 1024 rows.
    max_tile_bytes = 16 << 20
    t_pad = pl.cdiv(T, 128) * 128
    rows_by_bytes = max_tile_bytes // max(1, b_blk * H * itemsize)
    t_tile = max(128, (rows_by_bytes // 128) * 128)
    t_tile = min(t_tile, 1024, t_pad)

    # Ensure the scoped limit covers what we actually allocate:
    # 2x enc tile + 2x f32 out block + 2x v block + slack.
    enc_tile = b_blk * t_tile * H * itemsize
    out_blk = b_blk * t_tile * 4
    v_blk = b_blk * H * itemsize
    needed = 2 * enc_tile + 2 * out_blk + 2 * v_blk + (2 << 20)
    vmem_limit = min(max(vmem_limit, needed), phys - (8 << 20))
    return b_blk, t_tile, int(vmem_limit)


def vaswani_attention(encoder_outputs, last_hidden, wq_t, bq, wk_t, bk=None):
    """Pallas forward of VaswaniAttention.

    encoder_outputs: (B, T, H);  last_hidden: (B, H)
    wq_t, wk_t: (H, C) (transposed nn.Linear weights); bq, bk: (C,)
    bk only shifts every score of a row by the same constant, so it cancels in
    the softmax and never enters the computation.  Returns (B, T) f32 scores.
    """
    B, T, H = encoder_outputs.shape
    inv_sqrt_h = 1.0 / math.sqrt(H)
    f32 = jnp.float32

    # Fold query proj, key proj and the 1/sqrt(H) scale into one (H, H) matrix
    # + (H,) bias, then collapse them with last_hidden into a single (B, H)
    # score vector here in the wrapper (tiny GEMM for XLA; keeps the (H, H)
    # fused weight out of kernel VMEM entirely).
    w_fused = (wq_t.astype(f32) @ wk_t.astype(f32).T) * inv_sqrt_h      # (H, H)
    b_fused = (bq.astype(f32) @ wk_t.astype(f32).T) * inv_sqrt_h        # (H,)
    v = (last_hidden.astype(f32) @ w_fused + b_fused)                   # (B, H)
    v = v.astype(encoder_outputs.dtype)                                 # cast once

    b_blk, t_tile, vmem_limit = _pick_tiles(
        B, T, H, encoder_outputs.dtype.itemsize)
    n_b = pl.cdiv(B, b_blk)
    n_t = pl.cdiv(T, t_tile)
    t_pad = n_t * t_tile

    raw = pl.pallas_call(
        _vaswani_scores_kernel,
        out_shape=jax.ShapeDtypeStruct((B, t_pad), jnp.float32),
        grid_spec=pltpu.PrefetchScalarGridSpec(
            num_scalar_prefetch=0,
            grid=(n_b, n_t),
            in_specs=[
                pl.BlockSpec((b_blk, t_tile, H), lambda i, j: (i, j, 0)),  # enc tile
                pl.BlockSpec((b_blk, H), lambda i, j: (i, 0)),             # v vector
            ],
            out_specs=pl.BlockSpec((b_blk, t_tile), lambda i, j: (i, j)),
        ),
        compiler_params=pltpu.CompilerParams(
            dimension_semantics=("parallel", "parallel"),
            vmem_limit_bytes=vmem_limit,
        ),
    )(encoder_outputs, v)

    # Exact row softmax over the true T columns (the (B, T) score round-trip is
    # ~1/H of the enc HBM traffic, so this trailing XLA op is effectively free).
    return jax.nn.softmax(raw[:, :T], axis=-1)


def vaswani_attention_ref(encoder_outputs, last_hidden, wq_t, bq, wk_t, bk):
    """Pure-JAX reference mirroring the PyTorch forward (un-fused math, incl. bk)."""
    H = encoder_outputs.shape[-1]
    q = last_hidden @ wq_t + bq                       # (B, C)
    k = encoder_outputs @ wk_t + bk                   # (B, T, C)
    s = jnp.einsum("btc,bc->bt", k, q) / math.sqrt(H)
    return jax.nn.softmax(s, axis=1)


if __name__ == "__main__":
    def make_inputs(key, B, T, H, C, dtype=jnp.float32):
        k_enc, k_hid, k_wq, k_bq, k_wk, k_bk = jax.random.split(key, 6)
        enc = jax.random.normal(k_enc, (B, T, H), dtype=dtype)
        hid = jax.random.normal(k_hid, (B, H), dtype=dtype)
        # nn.Linear(H, C): weight (C, H), bias (C,), uniform(-1/sqrt(H), 1/sqrt(H))
        bound = 1.0 / math.sqrt(H)
        wq = jax.random.uniform(k_wq, (C, H), minval=-bound, maxval=bound, dtype=jnp.float32)
        bq = jax.random.uniform(k_bq, (C,), minval=-bound, maxval=bound, dtype=jnp.float32)
        wk = jax.random.uniform(k_wk, (C, H), minval=-bound, maxval=bound, dtype=jnp.float32)
        bk = jax.random.uniform(k_bk, (C,), minval=-bound, maxval=bound, dtype=jnp.float32)
        return enc, hid, wq, bq, wk, bk

    # Primary small case matching the module: B=2, T=8, hidden=32, context=16.
    enc, hid, wq, bq, wk, bk = make_inputs(jax.random.PRNGKey(0), 2, 8, 32, 16)
    out = jax.block_until_ready(vaswani_attention(enc, hid, wq.T, bq, wk.T, bk))
    ref = vaswani_attention_ref(enc, hid, wq.T, bq, wk.T, bk)
    assert out.shape == (2, 8)
    assert jnp.allclose(out, ref, atol=1e-5, rtol=1e-5), "mismatch vs reference (small)"
    assert jnp.allclose(jnp.sum(out, axis=1), jnp.ones((2,)), atol=1e-5)

    # Secondary case exercising multiple batch blocks, multiple T tiles and the
    # padded / partial last T tile: B=16 (2 batch blocks), T=1300 (t_tile=1024).
    enc, hid, wq, bq, wk, bk = make_inputs(jax.random.PRNGKey(1), 16, 1300, 32, 16)
    out = jax.block_until_ready(vaswani_attention(enc, hid, wq.T, bq, wk.T, bk))
    ref = vaswani_attention_ref(enc, hid, wq.T, bq, wk.T, bk)
    assert out.shape == (16, 1300)
    assert jnp.allclose(out, ref, atol=1e-5, rtol=1e-5), "mismatch vs reference (tiled)"

    print("KERNEL_OK")
</pallas_src>

<mosaic_0001>
module attributes {stable_mosaic.version = 11 : i64} {
  func.func @_vaswani_scores_kernel(%arg0: i32, %arg1: i32, %arg2: memref<2x128x32xf32, #tpu.memory_space<vmem>>, %arg3: memref<2x32xf32, #tpu.memory_space<vmem>>, %arg4: memref<2x128xf32, #tpu.memory_space<vmem>>) attributes {dimension_semantics = [#tpu.dimension_semantics<parallel>, #tpu.dimension_semantics<parallel>], iteration_bounds = array<i64: 1, 1>, scalar_prefetch = 0 : i64, scratch_operands = 0 : i64, tpu.core_type = #tpu.core_type<tc>, window_params = [{transform_indices = @transform_0, window_bounds = array<i64: 2, 128, 32>}, {transform_indices = @transform_1, window_bounds = array<i64: 2, 32>}, {transform_indices = @transform_2, window_bounds = array<i64: 2, 128>}]} {
    %c0 = arith.constant 0 : index
    %c0_0 = arith.constant 0 : index
    %c0_1 = arith.constant 0 : index
    %0 = vector.load %arg2[%c0, %c0_0, %c0_1] : memref<2x128x32xf32, #tpu.memory_space<vmem>>, vector<2x128x32xf32>
    %c0_2 = arith.constant 0 : index
    %c0_3 = arith.constant 0 : index
    %1 = vector.load %arg3[%c0_2, %c0_3] : memref<2x32xf32, #tpu.memory_space<vmem>>, vector<2x32xf32>
    "tpu.trace_start"() <{level = 10 : i32, message = "bth,bh->bt"}> : () -> ()
    %cst = arith.constant dense<0.000000e+00> : vector<2x128xf32>
    %2 = tpu.matmul %0, %1, %cst {dimension_numbers = #tpu.dot_dimension_numbers<[2], [1], [1], [], [0, 0, 0, 1], [0], [0]>} : vector<2x128x32xf32>, vector<2x32xf32>, vector<2x128xf32> -> vector<2x128xf32>
    "tpu.trace_stop"() : () -> ()
    %c0_4 = arith.constant 0 : index
    %c0_5 = arith.constant 0 : index
    %3 = vector.load %arg4[%c0_4, %c0_5] : memref<2x128xf32, #tpu.memory_space<vmem>>, vector<2x128xf32>
    tpu.vector_store %arg4[%c0_4, %c0_5], %2 {strides = array<i32>} : memref<2x128xf32, #tpu.memory_space<vmem>>, vector<2x128xf32>,
    return
  }
  func.func @transform_0(%arg0: i32, %arg1: i32) -> (i32, i32, i32) {
    %c0_i32 = arith.constant 0 : i32
    %c0_i32_0 = arith.constant 0 : i32
    return %arg0, %arg1, %c0_i32 : i32, i32, i32
  }
  func.func @transform_1(%arg0: i32, %arg1: i32) -> (i32, i32) {
    %c0_i32 = arith.constant 0 : i32
    %c0_i32_0 = arith.constant 0 : i32
    return %arg0, %c0_i32 : i32, i32
  }
  func.func @transform_2(%arg0: i32, %arg1: i32) -> (i32, i32) {
    %c0_i32 = arith.constant 0 : i32
    return %arg0, %arg1 : i32, i32
  }
}

</mosaic_0001>

<llo_original>
// kernel: tpu_custom_call.1
$region0: #{tpu_custom_call.1}
  #allocation0 [shape = 'u32[]', space=smem, size = 0x4, offset = 0x4, fixed_abs, tag = 'smem constant byte address 0x4 - core index']
  #allocation1 [shape = 'u32[72,128]{1,0:T(1,128)}', space=vmem, size = 0x9000, scoped, tag = 'internal scratch']
  #allocation8 [shape = 's32[]', space=sflag, size = 0x4, offset = 0, fixed_abs, tag = 'sflag constant byte address 0x0 - dummy sync flag']
  %s0 = inlined_call_operand.hbm [shape: f32[2,8,32], index: 0, kind: input, shape index: {}]
  %s1 = inlined_call_operand.hbm [shape: f32[2,32], index: 1, kind: input, shape index: {}]
  %s2 = inlined_call_operand.hbm [shape: f32[2,128], index: 2, kind: output, shape index: {}]
  %s3 = sld [smem:[#allocation0]]
  $region26: #{tpu_custom_call.1} parent=0
    _
  %s5 = ssub.s32 1, %s3
  %s6 = scalar_select 0, %s5, %s3
  $region1: #{tpu_custom_call.1} parent=0
    #allocation2 [shape = 'u8[131072]{0}', space=vmem, size = 0x20000, scoped, tag = 'input window, operand 0, single buffered']
    #allocation3 [shape = 's32[1]{0}', space=sflag, size = 0x4, scoped, tag = 'scoped memory for tpu_custom_call.1']
    #allocation4 [shape = 's32[1]{0}', space=sflag, size = 0x4, scoped, tag = 'scoped memory for tpu_custom_call.1']
    #allocation5 [shape = 'u8[1024]{0}', space=vmem, size = 0x400, scoped, tag = 'input window, operand 1, single buffered']
    #allocation6 [shape = 's32[1]{0}', space=sflag, size = 0x4, scoped, tag = 'scoped memory for tpu_custom_call.1']
    #allocation7 [shape = 'u8[1024]{0}', space=vmem, size = 0x400, scoped, tag = 'output window, operand 0, single buffered']
    %7 = vsyncpa [#allocation3], 0
    %8 = vsyncpa [#allocation6], 0
    %9 = vsyncpa [#allocation4], 0
    // Predicated region
    $region2: #{tpu_custom_call.1} parent=1 // pred_check
      _
    $region3: #{tpu_custom_call.1} parent=1 // pred_check_branch
      %11 = sbr.rel (0) target = $region5
    $region4: #{tpu_custom_call.1} parent=1 // pred_region
      #allocation9 [shape = 'u32[6]{0}', space=smem, size = 0x18, scoped, tag = 'DMA stride descriptor']
      %13 = vsyncadd [#allocation3], 3840
      %s15 = sshll.u32 1, 14
      %s16 = sxor.u32 4294967295, %s15
      %s18 = sld [smem:[#allocation0]]
      %s19 = sadd.s32 2, %s18
      %s21 = sshll.u32 7, 26
      %s22 = sxor.u32 4294967295, %s21
      %s23 = sand.u32 0, %s22
      %s24 = sshll.u32 %s19, 26
      %s25 = sor.u32 %s23, %s24
      %s26 = sshll.u32 %s0, 4
      %s27 = int_to_ptr.hbm [resolvable:$true] %s26
      %s28 = sshll.u32 [#allocation2], 4
      %s29 = int_to_ptr.vmem [resolvable:$true] %s28
      %35 = sst [smem:[#allocation9]] 128
      %s36 = scalar_lea.smem [#allocation9], 1
      %37 = sst [smem:[%s36]] 2048
      %s38 = scalar_lea.smem [#allocation9], 2
      %39 = sst [smem:[%s38]] 1
      %s40 = scalar_lea.smem [#allocation9], 3
      %41 = sst [smem:[%s40]] 128
      %s42 = scalar_lea.smem [#allocation9], 4
      %43 = sst [smem:[%s42]] 128
      %s44 = scalar_lea.smem [#allocation9], 5
      %45 = sst [smem:[%s44]] 8
      %47 = dma.general %s27, 256, %s29, [#allocation3], [#allocation8], [#allocation9], %s25, 0
    $region5: #{tpu_custom_call.1} parent=1 // pred_fallthru
      _
    // Predicated region
    $region6: #{tpu_custom_call.1} parent=1 // pred_check
      _
    $region7: #{tpu_custom_call.1} parent=1 // pred_check_branch
      %49 = sbr.rel (0) target = $region9
    $region8: #{tpu_custom_call.1} parent=1 // pred_region
      %51 = vsyncadd [#allocation6], 0
      %s53 = sshll.u32 %s1, 4
      %s54 = int_to_ptr.hbm [resolvable:$true] %s53
      %s55 = sshll.u32 [#allocation5], 4
      %s56 = int_to_ptr.vmem [resolvable:$true] %s55
      %58 = dma.hbm_to_vmem [thread:$0]  %s54, 32, %s56, [#allocation6]
    $region9: #{tpu_custom_call.1} parent=1 // pred_fallthru
      _
    // Predicated region
    $region10: #{tpu_custom_call.1} parent=1 // pred_check
      _
    $region11: #{tpu_custom_call.1} parent=1 // pred_check_branch
      %60 = sbr.rel (0) target = $region13
    $region12: #{tpu_custom_call.1} parent=1 // pred_region
      %62 = dma.done [#allocation3], 4096
    $region13: #{tpu_custom_call.1} parent=1 // pred_fallthru
      _
    // Predicated region
    $region14: #{tpu_custom_call.1} parent=1 // pred_check
      _
    $region15: #{tpu_custom_call.1} parent=1 // pred_check_branch
      %64 = sbr.rel (0) target = $region17
    $region16: #{tpu_custom_call.1} parent=1 // pred_region
      %66 = dma.done [#allocation6], 32
    $region17: #{tpu_custom_call.1} parent=1 // pred_fallthru
      _
    %v67 = vld [vmem:[#allocation2] sm:$0xff]
    %v68 = vld [vmem:[#allocation2 + $0x8] sm:$0xff]
    %v69 = vld [vmem:[#allocation2 + $0x10] sm:$0xff]
    %v70 = vld [vmem:[#allocation2 + $0x18] sm:$0xff]
    %v71 = vld [vmem:[#allocation2 + $0x20] sm:$0xff]
    %v72 = vld [vmem:[#allocation2 + $0x28] sm:$0xff]
    %v73 = vld [vmem:[#allocation2 + $0x30] sm:$0xff]
    %v74 = vld [vmem:[#allocation2 + $0x38] sm:$0xff]
    %v75 = vld [vmem:[#allocation2 + $0x40] sm:$0xff]
    %v76 = vld [vmem:[#allocation2 + $0x48] sm:$0xff]
    %v77 = vld [vmem:[#allocation2 + $0x50] sm:$0xff]
    %v78 = vld [vmem:[#allocation2 + $0x58] sm:$0xff]
    %v79 = vld [vmem:[#allocation2 + $0x60] sm:$0xff]
    %v80 = vld [vmem:[#allocation2 + $0x68] sm:$0xff]
    %v81 = vld [vmem:[#allocation2 + $0x70] sm:$0xff]
    %v82 = vld [vmem:[#allocation2 + $0x78] sm:$0xff]
    %v83 = vld [vmem:[#allocation2 + $0x80] sm:$0xff]
    %v84 = vld [vmem:[#allocation2 + $0x88] sm:$0xff]
    %v85 = vld [vmem:[#allocation2 + $0x90] sm:$0xff]
    %v86 = vld [vmem:[#allocation2 + $0x98] sm:$0xff]
    %v87 = vld [vmem:[#allocation2 + $0xa0] sm:$0xff]
    %v88 = vld [vmem:[#allocation2 + $0xa8] sm:$0xff]
    %v89 = vld [vmem:[#allocation2 + $0xb0] sm:$0xff]
    %v90 = vld [vmem:[#allocation2 + $0xb8] sm:$0xff]
    %v91 = vld [vmem:[#allocation2 + $0xc0] sm:$0xff]
    %v92 = vld [vmem:[#allocation2 + $0xc8] sm:$0xff]
    %v93 = vld [vmem:[#allocation2 + $0xd0] sm:$0xff]
    %v94 = vld [vmem:[#allocation2 + $0xd8] sm:$0xff]
    %v95 = vld [vmem:[#allocation2 + $0xe0] sm:$0xff]
    %v96 = vld [vmem:[#allocation2 + $0xe8] sm:$0xff]
    %v97 = vld [vmem:[#allocation2 + $0xf0] sm:$0xff]
    %v98 = vld [vmem:[#allocation2 + $0xf8] sm:$0xff]
    %v99 = vld [vmem:[#allocation5] sm:$0x3]
    %v100 = vperm.slane %v99, 0
    %v101 = vmul.f32 %v67, %v100
    %v102 = vmul.f32 %v68, %v100
    %v103 = vmul.f32 %v69, %v100
    %v104 = vmul.f32 %v70, %v100
    %v105 = vmul.f32 %v71, %v100
    %v106 = vmul.f32 %v72, %v100
    %v107 = vmul.f32 %v73, %v100
    %v108 = vmul.f32 %v74, %v100
    %v109 = vmul.f32 %v75, %v100
    %v110 = vmul.f32 %v76, %v100
    %v111 = vmul.f32 %v77, %v100
    %v112 = vmul.f32 %v78, %v100
    %v113 = vmul.f32 %v79, %v100
    %v114 = vmul.f32 %v80, %v100
    %v115 = vmul.f32 %v81, %v100
    %v116 = vmul.f32 %v82, %v100
    %vm117 = vcmask 261120
    %v118 = vsel %vm117, %v101, 0.0
    %119 = vadd.xlane.f32.xlu0 %v118
    %v120 = vpop.xlane.xlu0 %119
    %v121 = vsel %vm117, %v102, 0.0
    %122 = vadd.xlane.f32.xlu0 %v121
    %v123 = vpop.xlane.xlu0 %122
    %v124 = vsel %vm117, %v103, 0.0
    %125 = vadd.xlane.f32.xlu0 %v124
    %v126 = vpop.xlane.xlu0 %125
    %v127 = vsel %vm117, %v104, 0.0
    %128 = vadd.xlane.f32.xlu0 %v127
    %v129 = vpop.xlane.xlu0 %128
    %v130 = vsel %vm117, %v105, 0.0
    %131 = vadd.xlane.f32.xlu0 %v130
    %v132 = vpop.xlane.xlu0 %131
    %v133 = vsel %vm117, %v106, 0.0
    %134 = vadd.xlane.f32.xlu0 %v133
    %v135 = vpop.xlane.xlu0 %134
    %v136 = vsel %vm117, %v107, 0.0
    %137 = vadd.xlane.f32.xlu0 %v136
    %v138 = vpop.xlane.xlu0 %137
    %v139 = vsel %vm117, %v108, 0.0
    %140 = vadd.xlane.f32.xlu0 %v139
    %v141 = vpop.xlane.xlu0 %140
    %v142 = vsel %vm117, %v109, 0.0
    %143 = vadd.xlane.f32.xlu0 %v142
    %v144 = vpop.xlane.xlu0 %143
    %v145 = vsel %vm117, %v110, 0.0
    %146 = vadd.xlane.f32.xlu0 %v145
    %v147 = vpop.xlane.xlu0 %146
    %v148 = vsel %vm117, %v111, 0.0
    %149 = vadd.xlane.f32.xlu0 %v148
    %v150 = vpop.xlane.xlu0 %149
    %v151 = vsel %vm117, %v112, 0.0
    %152 = vadd.xlane.f32.xlu0 %v151
    %v153 = vpop.xlane.xlu0 %152
    %v154 = vsel %vm117, %v113, 0.0
    %155 = vadd.xlane.f32.xlu0 %v154
    %v156 = vpop.xlane.xlu0 %155
    %v157 = vsel %vm117, %v114, 0.0
    %158 = vadd.xlane.f32.xlu0 %v157
    %v159 = vpop.xlane.xlu0 %158
    %v160 = vsel %vm117, %v115, 0.0
    %161 = vadd.xlane.f32.xlu0 %v160
    %v162 = vpop.xlane.xlu0 %161
    %v163 = vsel %vm117, %v116, 0.0
    %164 = vadd.xlane.f32.xlu0 %v163
    %v165 = vpop.xlane.xlu0 %164
    %v166 = vperm.slane %v99, 1
    %v167 = vmul.f32 %v83, %v166
    %v168 = vmul.f32 %v84, %v166
    %v169 = vmul.f32 %v85, %v166
    %v170 = vmul.f32 %v86, %v166
    %v171 = vmul.f32 %v87, %v166
    %v172 = vmul.f32 %v88, %v166
    %v173 = vmul.f32 %v89, %v166
    %v174 = vmul.f32 %v90, %v166
    %v175 = vmul.f32 %v91, %v166
    %v176 = vmul.f32 %v92, %v166
    %v177 = vmul.f32 %v93, %v166
    %v178 = vmul.f32 %v94, %v166
    %v179 = vmul.f32 %v95, %v166
    %v180 = vmul.f32 %v96, %v166
    %v181 = vmul.f32 %v97, %v166
    %v182 = vmul.f32 %v98, %v166
    %v183 = vsel %vm117, %v167, 0.0
    %184 = vadd.xlane.f32.xlu0 %v183
    %v185 = vpop.xlane.xlu0 %184
    %v186 = vsel %vm117, %v168, 0.0
    %187 = vadd.xlane.f32.xlu0 %v186
    %v188 = vpop.xlane.xlu0 %187
    %v189 = vsel %vm117, %v169, 0.0
    %190 = vadd.xlane.f32.xlu0 %v189
    %v191 = vpop.xlane.xlu0 %190
    %v192 = vsel %vm117, %v170, 0.0
    %193 = vadd.xlane.f32.xlu0 %v192
    %v194 = vpop.xlane.xlu0 %193
    %v195 = vsel %vm117, %v171, 0.0
    %196 = vadd.xlane.f32.xlu0 %v195
    %v197 = vpop.xlane.xlu0 %196
    %v198 = vsel %vm117, %v172, 0.0
    %199 = vadd.xlane.f32.xlu0 %v198
    %v200 = vpop.xlane.xlu0 %199
    %v201 = vsel %vm117, %v173, 0.0
    %202 = vadd.xlane.f32.xlu0 %v201
    %v203 = vpop.xlane.xlu0 %202
    %v204 = vsel %vm117, %v174, 0.0
    %205 = vadd.xlane.f32.xlu0 %v204
    %v206 = vpop.xlane.xlu0 %205
    %v207 = vsel %vm117, %v175, 0.0
    %208 = vadd.xlane.f32.xlu0 %v207
    %v209 = vpop.xlane.xlu0 %208
    %v210 = vsel %vm117, %v176, 0.0
    %211 = vadd.xlane.f32.xlu0 %v210
    %v212 = vpop.xlane.xlu0 %211
    %v213 = vsel %vm117, %v177, 0.0
    %214 = vadd.xlane.f32.xlu0 %v213
    %v215 = vpop.xlane.xlu0 %214
    %v216 = vsel %vm117, %v178, 0.0
    %217 = vadd.xlane.f32.xlu0 %v216
    %v218 = vpop.xlane.xlu0 %217
    %v219 = vsel %vm117, %v179, 0.0
    %220 = vadd.xlane.f32.xlu0 %v219
    %v221 = vpop.xlane.xlu0 %220
    %v222 = vsel %vm117, %v180, 0.0
    %223 = vadd.xlane.f32.xlu0 %v222
    %v224 = vpop.xlane.xlu0 %223
    %v225 = vsel %vm117, %v181, 0.0
    %226 = vadd.xlane.f32.xlu0 %v225
    %v227 = vpop.xlane.xlu0 %226
    %v228 = vsel %vm117, %v182, 0.0
    %229 = vadd.xlane.f32.xlu0 %v228
    %v230 = vpop.xlane.xlu0 %229
    %v247 = vlaneseq
    %v248 = vand.u32 %v247, 127
    %v249 = vperm.slane %v120, %v248
    %v250 = vadd.s32 %v248, 4294967288
    %v251 = vperm.slane %v123, %v250
    %vm252 = vcmask 130112
    %v253 = vsel %vm252, %v251, %v249
    %v254 = vadd.s32 %v248, 4294967280
    %v255 = vperm.slane %v126, %v254
    %vm256 = vcmask 195712
    %v257 = vsel %vm256, %v255, %v253
    %v258 = vadd.s32 %v248, 4294967272
    %v259 = vperm.slane %v129, %v258
    %vm260 = vcmask 261312
    %v261 = vsel %vm260, %v259, %v257
    %v262 = vadd.s32 %v248, 4294967264
    %v263 = vperm.slane %v132, %v262
    %vm264 = vcmask 326912
    %v265 = vsel %vm264, %v263, %v261
    %v266 = vadd.s32 %v248, 4294967256
    %v267 = vperm.slane %v135, %v266
    %vm268 = vcmask 392512
    %v269 = vsel %vm268, %v267, %v265
    %v270 = vadd.s32 %v248, 4294967248
    %v271 = vperm.slane %v138, %v270
    %vm272 = vcmask 458112
    %v273 = vsel %vm272, %v271, %v269
    %v274 = vadd.s32 %v248, 4294967240
    %v275 = vperm.slane %v141, %v274
    %vm276 = vcmask 523712
    %v277 = vsel %vm276, %v275, %v273
    %v278 = vadd.s32 %v248, 4294967232
    %v279 = vperm.slane %v144, %v278
    %vm280 = vcmask 589312
    %v281 = vsel %vm280, %v279, %v277
    %v282 = vadd.s32 %v248, 4294967224
    %v283 = vperm.slane %v147, %v282
    %vm284 = vcmask 654912
    %v285 = vsel %vm284, %v283, %v281
    %v286 = vadd.s32 %v248, 4294967216
    %v287 = vperm.slane %v150, %v286
    %vm288 = vcmask 720512
    %v289 = vsel %vm288, %v287, %v285
    %v290 = vadd.s32 %v248, 4294967208
    %v291 = vperm.slane %v153, %v290
    %vm292 = vcmask 786112
    %v293 = vsel %vm292, %v291, %v289
    %v294 = vadd.s32 %v248, 4294967200
    %v295 = vperm.slane %v156, %v294
    %vm296 = vcmask 851712
    %v297 = vsel %vm296, %v295, %v293
    %v298 = vadd.s32 %v248, 4294967192
    %v299 = vperm.slane %v159, %v298
    %vm300 = vcmask 917312
    %v301 = vsel %vm300, %v299, %v297
    %v302 = vadd.s32 %v248, 4294967184
    %v303 = vperm.slane %v162, %v302
    %vm304 = vcmask 982912
    %v305 = vsel %vm304, %v303, %v301
    %v306 = vadd.s32 %v248, 4294967176
    %v307 = vperm.slane %v165, %v306
    %vm308 = vcmask 1048512
    %v309 = vsel %vm308, %v307, %v305
    %v327 = vperm.slane %v185, %v248
    %v328 = vperm.slane %v188, %v250
    %v329 = vsel %vm252, %v328, %v327
    %v330 = vperm.slane %v191, %v254
    %v331 = vsel %vm256, %v330, %v329
    %v332 = vperm.slane %v194, %v258
    %v333 = vsel %vm260, %v332, %v331
    %v334 = vperm.slane %v197, %v262
    %v335 = vsel %vm264, %v334, %v333
    %v336 = vperm.slane %v200, %v266
    %v337 = vsel %vm268, %v336, %v335
    %v338 = vperm.slane %v203, %v270
    %v339 = vsel %vm272, %v338, %v337
    %v340 = vperm.slane %v206, %v274
    %v341 = vsel %vm276, %v340, %v339
    %v342 = vperm.slane %v209, %v278
    %v343 = vsel %vm280, %v342, %v341
    %v344 = vperm.slane %v212, %v282
    %v345 = vsel %vm284, %v344, %v343
    %v346 = vperm.slane %v215, %v286
    %v347 = vsel %vm288, %v346, %v345
    %v348 = vperm.slane %v218, %v290
    %v349 = vsel %vm292, %v348, %v347
    %v350 = vperm.slane %v221, %v294
    %v351 = vsel %vm296, %v350, %v349
    %v352 = vperm.slane %v224, %v298
    %v353 = vsel %vm300, %v352, %v351
    %v354 = vperm.slane %v227, %v302
    %v355 = vsel %vm304, %v354, %v353
    %v356 = vperm.slane %v230, %v306
    %v357 = vsel %vm308, %v356, %v355
    %vm359 = vcmask 1040384
    %v360 = vsel %vm359, %v309, %v357
    %361 = vst [vmem:[#allocation7] sm:$0x3] %v360
    // Predicated region
    $region18: #{tpu_custom_call.1} parent=1 // pred_check
      _
    $region19: #{tpu_custom_call.1} parent=1 // pred_check_branch
      %363 = sbr.rel (0) target = $region21
    $region20: #{tpu_custom_call.1} parent=1 // pred_region
      %365 = vsyncadd [#allocation4], 0
      %s367 = sshll.u32 [#allocation7], 4
      %s368 = int_to_ptr.vmem [resolvable:$true] %s367
      %s369 = sshll.u32 %s2, 4
      %s370 = int_to_ptr.hbm [resolvable:$true] %s369
      %372 = dma.vmem_to_hbm [thread:$0]  %s368, 32, %s370, [#allocation4]
    $region21: #{tpu_custom_call.1} parent=1 // pred_fallthru
      _
    // Predicated region
    $region22: #{tpu_custom_call.1} parent=1 // pred_check
      _
    $region23: #{tpu_custom_call.1} parent=1 // pred_check_branch
      %374 = sbr.rel (0) target = $region25
    $region24: #{tpu_custom_call.1} parent=1 // pred_region
      %376 = dma.done [#allocation4], 32
    $region25: #{tpu_custom_call.1} parent=1 // pred_fallthru
      _
    %377 = vsyncpa [#allocation3], 1
    %378 = vsyncpa [#allocation6], 1
    %379 = vsyncpa [#allocation4], 1

</llo_original>
